<compile_context>
chip_gen: v6e
topology: v6e:2x2x1
jax: 0.10.0
libtpu: 0.0.40
codegen_flags: <defaults>
</compile_context>

<pallas_src>
import jax
import jax.numpy as jnp
import numpy as np
from jax.experimental import pallas as pl
from jax.experimental.pallas import tpu as pltpu

SQRT5 = 5.0 ** 0.5
ONE_THIRD = 1.0 / 3.0

TM_MAX = 512
TK_MAX = 1024


def _round_up(x, m):
    return (x + m - 1) // m * m


def _choose_test_tile(n_test, tm_max=TM_MAX):
    """Row tile: balance tiles, keep >=2 (even) tiles for megacore when sensible."""
    num_i = -(-n_test // tm_max)
    if n_test >= 16:
        num_i = max(num_i, 2)
        if num_i % 2:
            num_i += 1
    tm = _round_up(max(-(-n_test // num_i), 8), 8)
    return tm, num_i * tm


def _choose_train_tile(n_train, tk_max=TK_MAX):
    """Column tile: pad only to 128, pick tk minimizing padded work (prefer big tk)."""
    n_base = _round_up(max(n_train, 1), 128)
    best_tk, best_pad = 128, _round_up(n_base, 128)
    for tk in range(128, tk_max + 1, 128):
        padded = _round_up(n_base, tk)
        if padded < best_pad or (padded == best_pad and tk > best_tk):
            best_pad, best_tk = padded, tk
    return best_tk, best_pad


def gp_mean_kernel(xs_ref, xs_sq_ref, xtT2_ref, xt_sq_ref, alpha_ref, mean_ref,
                   out_ref):
    """Posterior-mean + exp hot path for one (test-tile, train-tile) grid step.

    xs_ref    : [TM, d]  test points, pre-scaled by sqrt(5)/lengthscale
    xs_sq_ref : [TM, 1]  squared norms of scaled test points
    xtT2_ref  : [d, TK]  2 * scaled train points, transposed
    xt_sq_ref : [1, TK]  squared norms of scaled train points
    alpha_ref : [TK, 1]  outputscale * (K+sigma^2 I)^{-1}(log y - mean_const)
    mean_ref  : SMEM [1] constant mean
    out_ref   : [TM, 1]  f32, resident across the k axis; final = exp(mu)
    """
    k_idx = pl.program_id(1)

    @pl.when(k_idx == 0)
    def _():
        out_ref[...] = jnp.zeros_like(out_ref)

    cross = jnp.dot(xs_ref[...], xtT2_ref[...],
                    precision=jax.lax.Precision.HIGHEST,
                    preferred_element_type=jnp.float32)            # [TM, TK] = 2 x.y
    d2 = jnp.maximum(xs_sq_ref[...] + xt_sq_ref[...] - cross, 0.0)  # (sqrt5*r)^2
    u = jnp.sqrt(d2)                                                # EUP
    kmat = (1.0 + u + d2 * ONE_THIRD) * jnp.exp(-u)                 # EUP + VPU
    out_ref[...] += jnp.dot(kmat, alpha_ref[...],
                            precision=jax.lax.Precision.HIGHEST,
                            preferred_element_type=jnp.float32)     # MXU matvec

    @pl.when(k_idx == pl.num_programs(1) - 1)
    def _():
        out_ref[...] = jnp.exp(out_ref[...] + mean_ref[0])


def cost_model_gp_forward(X_test, X_train, alpha, lengthscale, outputscale,
                          mean_const):
    """Returns exp(gp(X_test).mean), shape [n_test]."""
    n_test, d = X_test.shape
    n_train = X_train.shape[0]

    tm, n_test_p = _choose_test_tile(n_test)
    tk, n_train_p = _choose_train_tile(n_train)

    # sqrt(5)/lengthscale folded into both point sets; factor 2 folded into xtT.
    scale = (SQRT5 / lengthscale).reshape(1, d).astype(jnp.float32)
    xt_s = X_train.astype(jnp.float32) * scale                       # [ntr, d]
    xs_s = X_test.astype(jnp.float32) * scale                        # [nte, d]

    xtT2 = jnp.zeros((d, n_train_p), jnp.float32).at[:, :n_train].set(
        2.0 * xt_s.T)
    xt_sq = jnp.zeros((1, n_train_p), jnp.float32).at[:, :n_train].set(
        jnp.sum(xt_s * xt_s, axis=-1)[None, :])
    alpha_s = jnp.zeros((n_train_p, 1), jnp.float32).at[:n_train, :].set(
        jnp.asarray(outputscale, jnp.float32)
        * alpha.astype(jnp.float32).reshape(n_train, 1))
    xs_p = jnp.zeros((n_test_p, d), jnp.float32).at[:n_test, :].set(xs_s)
    xs_sq = jnp.zeros((n_test_p, 1), jnp.float32).at[:n_test, :].set(
        jnp.sum(xs_s * xs_s, axis=-1, keepdims=True))
    mean_c = jnp.asarray(mean_const, jnp.float32).reshape(1)

    grid = (n_test_p // tm, n_train_p // tk)

    # A handful of [TM, TK] f32 temps (2 MiB each at max tile) + tiny inputs.
    tile_bytes = tm * tk * 4
    vmem_limit = int(min(60 * 2**20, max(32 * 2**20, 16 * tile_bytes)))

    out = pl.pallas_call(
        gp_mean_kernel,
        out_shape=jax.ShapeDtypeStruct((n_test_p, 1), jnp.float32),
        grid_spec=pltpu.PrefetchScalarGridSpec(
            num_scalar_prefetch=0,
            grid=grid,
            in_specs=[
                pl.BlockSpec((tm, d), lambda i, k: (i, 0)),   # scaled X_test tile
                pl.BlockSpec((tm, 1), lambda i, k: (i, 0)),   # |xs|^2 tile
                pl.BlockSpec((d, tk), lambda i, k: (0, k)),   # 2*xt^T tile
                pl.BlockSpec((1, tk), lambda i, k: (0, k)),   # |xt|^2 tile
                pl.BlockSpec((tk, 1), lambda i, k: (k, 0)),   # alpha tile
                pl.BlockSpec(memory_space=pltpu.MemorySpace.SMEM),  # mean_const
            ],
            out_specs=pl.BlockSpec((tm, 1), lambda i, k: (i, 0)),
        ),
        compiler_params=pltpu.CompilerParams(
            dimension_semantics=("parallel", "arbitrary"),
            vmem_limit_bytes=vmem_limit),
    )(xs_p, xs_sq, xtT2, xt_sq, alpha_s, mean_c)
    return out[:n_test, 0]


# ----------------------------- glue / reference -----------------------------
def matern52(A, B, inv_ls, outputscale):
    As = A * inv_ls
    Bs = B * inv_ls
    d2 = jnp.maximum(
        jnp.sum(As * As, -1, keepdims=True) + jnp.sum(Bs * Bs, -1)[None, :]
        - 2.0 * jnp.dot(As, Bs.T, precision=jax.lax.Precision.HIGHEST), 0.0)
    r = jnp.sqrt(d2)
    return outputscale * (1.0 + SQRT5 * r + (5.0 / 3.0) * d2) * jnp.exp(-SQRT5 * r)


def _make_problem(key, n_train, n_test, d, lengthscale_val, outputscale_val,
                  noise_val):
    k1, k2, k3 = jax.random.split(key, 3)
    X_train = jax.random.uniform(k1, (n_train, d), dtype=jnp.float32)
    Y_cost = jnp.exp(0.5 * jax.random.normal(k2, (n_train, 1), dtype=jnp.float32)
                     + 1.0)                                  # strictly positive costs
    X_test = jax.random.uniform(k3, (n_test, d), dtype=jnp.float32)

    # Deterministic GP hyperparameters (stand-in for fit_gpytorch_mll training).
    # TODO(synk): fit_gpytorch_mll hyperparameter optimization has no Pallas
    # equivalent; hyperparameters are fixed and alpha is precomputed in JAX.
    lengthscale = jnp.full((d,), lengthscale_val, dtype=jnp.float32)
    outputscale = jnp.float32(outputscale_val)
    noise = jnp.float32(noise_val)

    y_log = jnp.log(Y_cost)                                  # Log outcome transform
    mean_const = jnp.float32(jnp.mean(y_log))
    inv_ls = 1.0 / lengthscale

    K = matern52(X_train, X_train, inv_ls[None, :], outputscale)
    alpha = jnp.linalg.solve(K + noise * jnp.eye(n_train, dtype=jnp.float32),
                             y_log - mean_const)             # [n_train, 1]
    return X_train, X_test, alpha, lengthscale, outputscale, mean_const, inv_ls


def _reference(X_test, X_train, alpha, inv_ls, outputscale, mean_const):
    mu = mean_const + jnp.dot(
        matern52(X_test, X_train, inv_ls[None, :], outputscale), alpha,
        precision=jax.lax.Precision.HIGHEST)
    return jnp.exp(mu).reshape(X_test.shape[0])


if __name__ == "__main__":
    key = jax.random.PRNGKey(0)
    key_small, key_big = jax.random.split(key)

    # --- small test (module's natural scale) ---
    (X_train, X_test, alpha, ls, os_, mc, inv_ls) = _make_problem(
        key_small, n_train=16, n_test=8, d=4,
        lengthscale_val=0.7, outputscale_val=1.3, noise_val=1e-2)
    out = jax.block_until_ready(
        cost_model_gp_forward(X_test, X_train, alpha, ls, os_, mc))
    ref = _reference(X_test, X_train, alpha, inv_ls, os_, mc)
    np.testing.assert_allclose(np.asarray(out), np.asarray(ref),
                               rtol=1e-4, atol=1e-5)

    # --- larger test: exercises the 2-D tiled grid, padding and accumulation ---
    (X_train, X_test, alpha, ls, os_, mc, inv_ls) = _make_problem(
        key_big, n_train=400, n_test=300, d=6,
        lengthscale_val=1.0, outputscale_val=1.3, noise_val=5e-2)
    out = jax.block_until_ready(
        cost_model_gp_forward(X_test, X_train, alpha, ls, os_, mc))
    ref = _reference(X_test, X_train, alpha, inv_ls, os_, mc)
    np.testing.assert_allclose(np.asarray(out), np.asarray(ref),
                               rtol=2e-3, atol=1e-3)

    print("KERNEL_OK")
</pallas_src>

<mosaic_0001>
module attributes {stable_mosaic.version = 11 : i64} {
  func.func @gp_mean_kernel(%arg0: i32, %arg1: i32, %arg2: memref<8x4xf32, #tpu.memory_space<vmem>>, %arg3: memref<8x1xf32, #tpu.memory_space<vmem>>, %arg4: memref<4x128xf32, #tpu.memory_space<vmem>>, %arg5: memref<1x128xf32, #tpu.memory_space<vmem>>, %arg6: memref<128x1xf32, #tpu.memory_space<vmem>>, %arg7: memref<1xf32, #tpu.memory_space<smem>>, %arg8: memref<8x1xf32, #tpu.memory_space<vmem>>) attributes {dimension_semantics = [#tpu.dimension_semantics<parallel>, #tpu.dimension_semantics<arbitrary>], iteration_bounds = array<i64: 1, 1>, scalar_prefetch = 0 : i64, scratch_operands = 0 : i64, tpu.core_type = #tpu.core_type<tc>, window_params = [{transform_indices = @transform_0, window_bounds = array<i64: 8, 4>}, {transform_indices = @transform_1, window_bounds = array<i64: 8, 1>}, {transform_indices = @transform_2, window_bounds = array<i64: 4, 128>}, {transform_indices = @transform_3, window_bounds = array<i64: 1, 128>}, {transform_indices = @transform_4, window_bounds = array<i64: 128, 1>}, {transform_indices = @transform_5, window_bounds = array<i64: 1>}, {transform_indices = @transform_6, window_bounds = array<i64: 8, 1>}]} {
    %c0_i32 = arith.constant 0 : i32
    %0 = arith.cmpi eq, %arg1, %c0_i32 : i32
    %1 = arith.extui %0 : i1 to i32
    %c0_i32_0 = arith.constant 0 : i32
    %2 = arith.cmpi ne, %1, %c0_i32_0 : i32
    scf.if %2 {
      %cst_21 = arith.constant 0.000000e+00 : f32
      %32 = vector.broadcast %cst_21 : f32 to vector<8x1xf32>
      %c0_22 = arith.constant 0 : index
      %c0_23 = arith.constant 0 : index
      %33 = vector.load %arg8[%c0_22, %c0_23] : memref<8x1xf32, #tpu.memory_space<vmem>>, vector<8x1xf32>
      tpu.vector_store %arg8[%c0_22, %c0_23], %32 {strides = array<i32>} : memref<8x1xf32, #tpu.memory_space<vmem>>, vector<8x1xf32>,
    } else {
    }
    %c0 = arith.constant 0 : index
    %c0_1 = arith.constant 0 : index
    %3 = vector.load %arg2[%c0, %c0_1] : memref<8x4xf32, #tpu.memory_space<vmem>>, vector<8x4xf32>
    %c0_2 = arith.constant 0 : index
    %c0_3 = arith.constant 0 : index
    %4 = vector.load %arg4[%c0_2, %c0_3] : memref<4x128xf32, #tpu.memory_space<vmem>>, vector<4x128xf32>
    %cst = arith.constant dense<0.000000e+00> : vector<8x128xf32>
    %5 = tpu.matmul %3, %4, %cst {dimension_numbers = #tpu.dot_dimension_numbers<[1], [0], [0], [1], [0, 0, 1, 1], [], []>, precision = #tpu.contract_precision<fp32>} : vector<8x4xf32>, vector<4x128xf32>, vector<8x128xf32> -> vector<8x128xf32>
    %c0_4 = arith.constant 0 : index
    %c0_5 = arith.constant 0 : index
    %6 = vector.load %arg3[%c0_4, %c0_5] : memref<8x1xf32, #tpu.memory_space<vmem>>, vector<8x1xf32>
    %c0_6 = arith.constant 0 : index
    %c0_7 = arith.constant 0 : index
    %7 = vector.load %arg5[%c0_6, %c0_7] : memref<1x128xf32, #tpu.memory_space<vmem>>, vector<1x128xf32>
    %8 = vector.broadcast %6 : vector<8x1xf32> to vector<8x128xf32>
    %9 = vector.broadcast %7 : vector<1x128xf32> to vector<8x128xf32>
    %10 = arith.addf %8, %9 : vector<8x128xf32>
    %11 = arith.subf %10, %5 : vector<8x128xf32>
    %cst_8 = arith.constant 0.000000e+00 : f32
    %12 = vector.broadcast %cst_8 : f32 to vector<8x128xf32>
    %13 = arith.maximumf %11, %12 : vector<8x128xf32>
    %14 = math.sqrt %13 : vector<8x128xf32>
    %cst_9 = arith.constant 1.000000e+00 : f32
    %15 = vector.broadcast %cst_9 : f32 to vector<8x128xf32>
    %16 = arith.addf %15, %14 : vector<8x128xf32>
    %cst_10 = arith.constant 0.333333343 : f32
    %17 = vector.broadcast %cst_10 : f32 to vector<8x128xf32>
    %18 = arith.mulf %13, %17 : vector<8x128xf32>
    %19 = arith.addf %16, %18 : vector<8x128xf32>
    %cst_11 = arith.constant 0.000000e+00 : f32
    %20 = vector.broadcast %cst_11 : f32 to vector<8x128xf32>
    %21 = arith.subf %20, %14 : vector<8x128xf32>
    %22 = math.exp %21 : vector<8x128xf32>
    %23 = arith.mulf %19, %22 : vector<8x128xf32>
    %c0_12 = arith.constant 0 : index
    %c0_13 = arith.constant 0 : index
    %24 = vector.load %arg8[%c0_12, %c0_13] : memref<8x1xf32, #tpu.memory_space<vmem>>, vector<8x1xf32>
    %c0_14 = arith.constant 0 : index
    %c0_15 = arith.constant 0 : index
    %25 = vector.load %arg6[%c0_14, %c0_15] : memref<128x1xf32, #tpu.memory_space<vmem>>, vector<128x1xf32>
    %cst_16 = arith.constant dense<0.000000e+00> : vector<8x1xf32>
    %26 = tpu.matmul %23, %25, %cst_16 {dimension_numbers = #tpu.dot_dimension_numbers<[1], [0], [0], [1], [0, 0, 1, 1], [], []>, precision = #tpu.contract_precision<fp32>} : vector<8x128xf32>, vector<128x1xf32>, vector<8x1xf32> -> vector<8x1xf32>
    %27 = arith.addf %24, %26 : vector<8x1xf32>
    %c0_17 = arith.constant 0 : index
    %c0_18 = arith.constant 0 : index
    %28 = vector.load %arg8[%c0_17, %c0_18] : memref<8x1xf32, #tpu.memory_space<vmem>>, vector<8x1xf32>
    tpu.vector_store %arg8[%c0_17, %c0_18], %27 {strides = array<i32>} : memref<8x1xf32, #tpu.memory_space<vmem>>, vector<8x1xf32>,
    %c0_i32_19 = arith.constant 0 : i32
    %29 = arith.cmpi eq, %arg1, %c0_i32_19 : i32
    %30 = arith.extui %29 : i1 to i32
    %c0_i32_20 = arith.constant 0 : i32
    %31 = arith.cmpi ne, %30, %c0_i32_20 : i32
    scf.if %31 {
      %c0_21 = arith.constant 0 : index
      %c0_22 = arith.constant 0 : index
      %32 = vector.load %arg8[%c0_21, %c0_22] : memref<8x1xf32, #tpu.memory_space<vmem>>, vector<8x1xf32>
      %c0_23 = arith.constant 0 : index
      %33 = memref.load %arg7[%c0_23] : memref<1xf32, #tpu.memory_space<smem>>
      %34 = vector.broadcast %33 : f32 to vector<8x1xf32>
      %35 = arith.addf %32, %34 : vector<8x1xf32>
      %36 = math.exp %35 : vector<8x1xf32>
      %c0_24 = arith.constant 0 : index
      %c0_25 = arith.constant 0 : index
      %37 = vector.load %arg8[%c0_24, %c0_25] : memref<8x1xf32, #tpu.memory_space<vmem>>, vector<8x1xf32>
      tpu.vector_store %arg8[%c0_24, %c0_25], %36 {strides = array<i32>} : memref<8x1xf32, #tpu.memory_space<vmem>>, vector<8x1xf32>,
    } else {
    }
    return
  }
  func.func @transform_0(%arg0: i32, %arg1: i32) -> (i32, i32) {
    %c0_i32 = arith.constant 0 : i32
    %c0_i32_0 = arith.constant 0 : i32
    return %arg0, %c0_i32 : i32, i32
  }
  func.func @transform_1(%arg0: i32, %arg1: i32) -> (i32, i32) {
    %c0_i32 = arith.constant 0 : i32
    %c0_i32_0 = arith.constant 0 : i32
    return %arg0, %c0_i32 : i32, i32
  }
  func.func @transform_2(%arg0: i32, %arg1: i32) -> (i32, i32) {
    %c0_i32 = arith.constant 0 : i32
    %c0_i32_0 = arith.constant 0 : i32
    return %c0_i32, %arg1 : i32, i32
  }
  func.func @transform_3(%arg0: i32, %arg1: i32) -> (i32, i32) {
    %c0_i32 = arith.constant 0 : i32
    %c0_i32_0 = arith.constant 0 : i32
    return %c0_i32, %arg1 : i32, i32
  }
  func.func @transform_4(%arg0: i32, %arg1: i32) -> (i32, i32) {
    %c0_i32 = arith.constant 0 : i32
    %c0_i32_0 = arith.constant 0 : i32
    return %arg1, %c0_i32 : i32, i32
  }
  func.func @transform_5(%arg0: i32, %arg1: i32) -> i32 {
    %c0_i32 = arith.constant 0 : i32
    %c0_i32_0 = arith.constant 0 : i32
    return %c0_i32 : i32
  }
  func.func @transform_6(%arg0: i32, %arg1: i32) -> (i32, i32) {
    %c0_i32 = arith.constant 0 : i32
    %c0_i32_0 = arith.constant 0 : i32
    return %arg0, %c0_i32 : i32, i32
  }
}

</mosaic_0001>

<llo_original>
// kernel: tpu_custom_call.1
$region0: #{tpu_custom_call.1}
  #allocation0 [shape = 'u32[]', space=smem, size = 0x4, offset = 0x4, fixed_abs, tag = 'smem constant byte address 0x4 - core index']
  #allocation1 [shape = 'u32[144,128]{1,0:T(1,128)}', space=vmem, size = 0x12000, scoped, tag = 'internal scratch']
  #allocation2 [shape = 'f32[1]{0:T(128)S(6)}', space=smem, size = 0x200, scoped, tag = 'scoped memory for tpu_custom_call.1']
  %s0 = inlined_call_operand.vmem [shape: f32[8,4], index: 0, kind: input, shape index: {}]
  %s1 = inlined_call_operand.vmem [shape: f32[8,1], index: 1, kind: input, shape index: {}]
  %s2 = inlined_call_operand.vmem [shape: f32[4,128], index: 2, kind: input, shape index: {}]
  %s3 = inlined_call_operand.vmem [shape: f32[1,128], index: 3, kind: input, shape index: {}]
  %s4 = inlined_call_operand.vmem [shape: f32[128,1], index: 4, kind: input, shape index: {}]
  %s5 = inlined_call_operand.<no memory space> [shape: f32[1], index: 5, kind: input, shape index: {}]
  %s6 = inlined_call_operand.vmem [shape: f32[8,1], index: 6, kind: output, shape index: {}]
  %s7 = sld [smem:[#allocation0]]
  $region42: #{tpu_custom_call.1} parent=0
    _
  %s9 = ssub.s32 1, %s7
  %s10 = scalar_select 0, %s9, %s7
  %11 = sst [smem:[#allocation2]] %s5
  // Predicated region
  $region2: #{tpu_custom_call.1} parent=0 // pred_check
    _
  $region3: #{tpu_custom_call.1} parent=0 // pred_check_branch
    %13 = sbr.rel (0) target = $region5
  $region4: #{tpu_custom_call.1} parent=0 // pred_region
    _
  $region5: #{tpu_custom_call.1} parent=0 // pred_fallthru
    _
  // Predicated region
  $region6: #{tpu_custom_call.1} parent=0 // pred_check
    _
  $region7: #{tpu_custom_call.1} parent=0 // pred_check_branch
    %15 = sbr.rel (0) target = $region9
  $region8: #{tpu_custom_call.1} parent=0 // pred_region
    _
  $region9: #{tpu_custom_call.1} parent=0 // pred_fallthru
    _
  // Predicated region
  $region10: #{tpu_custom_call.1} parent=0 // pred_check
    _
  $region11: #{tpu_custom_call.1} parent=0 // pred_check_branch
    %17 = sbr.rel (0) target = $region13
  $region12: #{tpu_custom_call.1} parent=0 // pred_region
    _
  $region13: #{tpu_custom_call.1} parent=0 // pred_fallthru
    _
  // Predicated region
  $region14: #{tpu_custom_call.1} parent=0 // pred_check
    _
  $region15: #{tpu_custom_call.1} parent=0 // pred_check_branch
    %19 = sbr.rel (0) target = $region17
  $region16: #{tpu_custom_call.1} parent=0 // pred_region
    _
  $region17: #{tpu_custom_call.1} parent=0 // pred_fallthru
    _
  // Predicated region
  $region18: #{tpu_custom_call.1} parent=0 // pred_check
    _
  $region19: #{tpu_custom_call.1} parent=0 // pred_check_branch
    %21 = sbr.rel (0) target = $region21
  $region20: #{tpu_custom_call.1} parent=0 // pred_region
    _
  $region21: #{tpu_custom_call.1} parent=0 // pred_fallthru
    _
  // Predicated region
  $region22: #{tpu_custom_call.1} parent=0 // pred_check
    _
  $region23: #{tpu_custom_call.1} parent=0 // pred_check_branch
    %23 = sbr.rel (0) target = $region25
  $region24: #{tpu_custom_call.1} parent=0 // pred_region
    _
  $region25: #{tpu_custom_call.1} parent=0 // pred_fallthru
    _
  %p24 = scmp.eq.s32.totalorder 0, 0
  // Predicated region
  $region26: #{tpu_custom_call.1} parent=0 // pred_check
    %p25 = pneg %p24
  $region27: #{tpu_custom_call.1} parent=0 // pred_check_branch
    %27 = sbr.rel (%p25) target = $region29
  $region28: #{tpu_custom_call.1} parent=0 // pred_region
    %vm28 = vcmask 7168
    %29 = vst.msk [vmem:[%s6] sm:$0xff] %vm28, 0.0
  $region29: #{tpu_custom_call.1} parent=0 // pred_fallthru
    _
  %v30 = vld [vmem:[%s0] sm:$0xff]
  %v31 = vld [vmem:[%s2] sm:$0xf]
  %vm32 = vcmask 31744
  %v34 = vsel %vm32, %v30, 0
  %vm36 = vcmask 1043456
  %v38 = vsel %vm36, %v31, 0
  %40 = vmatprep.subr.mxu0 0.0
  %41 = vmatpush1.msra.mxu0 0.0
  %42 = vmatprep.subr.mxu0 0.0
  %43 = vmatpush1.msra.mxu0 0.0
  %44 = vmatprep.subr.mxu0 0.0
  %45 = vmatpush1.msra.mxu0 0.0
  %46 = vmatprep.subr.mxu0 0.0
  %47 = vmatpush1.msra.mxu0 0.0
  %48 = vmatprep.subr.mxu0 0.0
  %49 = vmatpush1.msra.mxu0 0.0
  %50 = vmatprep.subr.mxu0 0.0
  %51 = vmatpush1.msra.mxu0 0.0
  %52 = vmatprep.subr.mxu0 0.0
  %53 = vmatpush1.msra.mxu0 0.0
  %54 = vmatprep.subr.mxu0 0.0
  %55 = vmatpush1.msra.mxu0 0.0
  %56 = vmatprep.subr.mxu0 0.0
  %57 = vmatpush1.msra.mxu0 0.0
  %58 = vmatprep.subr.mxu0 0.0
  %59 = vmatpush1.msra.mxu0 0.0
  %60 = vmatprep.subr.mxu0 0.0
  %61 = vmatpush1.msra.mxu0 0.0
  %62 = vmatprep.subr.mxu0 0.0
  %63 = vmatpush1.msra.mxu0 0.0
  %64 = vmatprep.subr.mxu0 0.0
  %65 = vmatpush1.msra.mxu0 0.0
  %66 = vmatprep.subr.mxu0 0.0
  %67 = vmatpush1.msra.mxu0 0.0
  %68 = vmatprep.subr.mxu0 0.0
  %69 = vmatpush1.msra.mxu0 0.0
  %70 = vmatprep.subr.mxu0 0.0
  %v71 = vand.u32 %v38, 4294901760
  %72 = vmatpush1.msra.mxu0 %v71
  %73 = vmatprep.subr.mxu0 0.0
  %74 = vmatpush2.msra.mxu0 0.0
  %75 = vmatprep.subr.mxu0 0.0
  %76 = vmatpush2.msra.mxu0 0.0
  %77 = vmatprep.subr.mxu0 0.0
  %78 = vmatpush2.msra.mxu0 0.0
  %79 = vmatprep.subr.mxu0 0.0
  %80 = vmatpush2.msra.mxu0 0.0
  %81 = vmatprep.subr.mxu0 0.0
  %82 = vmatpush2.msra.mxu0 0.0
  %83 = vmatprep.subr.mxu0 0.0
  %84 = vmatpush2.msra.mxu0 0.0
  %85 = vmatprep.subr.mxu0 0.0
  %86 = vmatpush2.msra.mxu0 0.0
  %87 = vmatprep.subr.mxu0 0.0
  %88 = vmatpush2.msra.mxu0 0.0
  %89 = vmatprep.subr.mxu0 0.0
  %90 = vmatpush2.msra.mxu0 0.0
  %91 = vmatprep.subr.mxu0 0.0
  %92 = vmatpush2.msra.mxu0 0.0
  %93 = vmatprep.subr.mxu0 0.0
  %94 = vmatpush2.msra.mxu0 0.0
  %95 = vmatprep.subr.mxu0 0.0
  %96 = vmatpush2.msra.mxu0 0.0
  %97 = vmatprep.subr.mxu0 0.0
  %98 = vmatpush2.msra.mxu0 0.0
  %99 = vmatprep.subr.mxu0 0.0
  %100 = vmatpush2.msra.mxu0 0.0
  %101 = vmatprep.subr.mxu0 0.0
  %102 = vmatpush2.msra.mxu0 0.0
  %103 = vmatprep.subr.mxu0 0.0
  %104 = vmatpush2.msra.mxu0 0.0
  %105 = vmatprep.mubr.f32.mxu0 0.0
  %v106 = vand.u32 %v34, 4294901760
  %v107 = vsub.f32 %v34, %v106
  %v108 = vand.u32 %v107, 4294901760
  %v109 = vsub.f32 %v107, %v108
  %v110 = vand.u32 %v109, 4294901760
  %111 = vmatmul.mubr.f32.gmra.mxu0 %v110
  %v112 = vpop.f32.mrf.mxu0
  %v113 = vadd.f32 0.0, %v112
  %v114 = vpop.f32.mrf.mxu0
  %115 = vdwg.mxu0
  %116 = vmatprep.subr.mxu0 0.0
  %117 = vmatpush1.msra.mxu0 0.0
  %118 = vmatprep.subr.mxu0 0.0
  %119 = vmatpush1.msra.mxu0 0.0
  %120 = vmatprep.subr.mxu0 0.0
  %121 = vmatpush1.msra.mxu0 0.0
  %122 = vmatprep.subr.mxu0 0.0
  %123 = vmatpush1.msra.mxu0 0.0
  %124 = vmatprep.subr.mxu0 0.0
  %125 = vmatpush1.msra.mxu0 0.0
  %126 = vmatprep.subr.mxu0 0.0
  %127 = vmatpush1.msra.mxu0 0.0
  %128 = vmatprep.subr.mxu0 0.0
  %129 = vmatpush1.msra.mxu0 0.0
  %130 = vmatprep.subr.mxu0 0.0
  %131 = vmatpush1.msra.mxu0 0.0
  %132 = vmatprep.subr.mxu0 0.0
  %133 = vmatpush1.msra.mxu0 0.0
  %134 = vmatprep.subr.mxu0 0.0
  %135 = vmatpush1.msra.mxu0 0.0
  %136 = vmatprep.subr.mxu0 0.0
  %137 = vmatpush1.msra.mxu0 0.0
  %138 = vmatprep.subr.mxu0 0.0
  %139 = vmatpush1.msra.mxu0 0.0
  %140 = vmatprep.subr.mxu0 0.0
  %141 = vmatpush1.msra.mxu0 0.0
  %142 = vmatprep.subr.mxu0 0.0
  %143 = vmatpush1.msra.mxu0 0.0
  %144 = vmatprep.subr.mxu0 0.0
  %145 = vmatpush1.msra.mxu0 0.0
  %146 = vmatprep.subr.mxu0 0.0
  %v147 = vand.u32 %v38, 4294901760
  %v148 = vsub.f32 %v38, %v147
  %v149 = vand.u32 %v148, 4294901760
  %v150 = vsub.f32 %v148, %v149
  %v151 = vand.u32 %v150, 4294901760
  %152 = vmatpush1.msra.mxu0 %v151
  %153 = vmatprep.subr.mxu0 0.0
  %154 = vmatpush2.msra.mxu0 0.0
  %155 = vmatprep.subr.mxu0 0.0
  %156 = vmatpush2.msra.mxu0 0.0
  %157 = vmatprep.subr.mxu0 0.0
  %158 = vmatpush2.msra.mxu0 0.0
  %159 = vmatprep.subr.mxu0 0.0
  %160 = vmatpush2.msra.mxu0 0.0
  %161 = vmatprep.subr.mxu0 0.0
  %162 = vmatpush2.msra.mxu0 0.0
  %163 = vmatprep.subr.mxu0 0.0
  %164 = vmatpush2.msra.mxu0 0.0
  %165 = vmatprep.subr.mxu0 0.0
  %166 = vmatpush2.msra.mxu0 0.0
  %167 = vmatprep.subr.mxu0 0.0
  %168 = vmatpush2.msra.mxu0 0.0
  %169 = vmatprep.subr.mxu0 0.0
  %170 = vmatpush2.msra.mxu0 0.0
  %171 = vmatprep.subr.mxu0 0.0
  %172 = vmatpush2.msra.mxu0 0.0
  %173 = vmatprep.subr.mxu0 0.0
  %174 = vmatpush2.msra.mxu0 0.0
  %175 = vmatprep.subr.mxu0 0.0
  %176 = vmatpush2.msra.mxu0 0.0
  %177 = vmatprep.subr.mxu0 0.0
  %178 = vmatpush2.msra.mxu0 0.0
  %179 = vmatprep.subr.mxu0 0.0
  %180 = vmatpush2.msra.mxu0 0.0
  %181 = vmatprep.subr.mxu0 0.0
  %182 = vmatpush2.msra.mxu0 0.0
  %183 = vmatprep.subr.mxu0 0.0
  %184 = vmatpush2.msra.mxu0 0.0
  %185 = vmatprep.mubr.f32.mxu0 0.0
  %v186 = vand.u32 %v34, 4294901760
  %187 = vmatmul.mubr.f32.gmra.mxu0 %v186
  %v188 = vpop.f32.mrf.mxu0
  %v189 = vadd.f32 %v113, %v188
  %v190 = vpop.f32.mrf.mxu0
  %191 = vdwg.mxu0
  %192 = vmatprep.subr.mxu0 0.0
  %193 = vmatpush1.msra.mxu0 0.0
  %194 = vmatprep.subr.mxu0 0.0
  %195 = vmatpush1.msra.mxu0 0.0
  %196 = vmatprep.subr.mxu0 0.0
  %197 = vmatpush1.msra.mxu0 0.0
  %198 = vmatprep.subr.mxu0 0.0
  %199 = vmatpush1.msra.mxu0 0.0
  %200 = vmatprep.subr.mxu0 0.0
  %201 = vmatpush1.msra.mxu0 0.0
  %202 = vmatprep.subr.mxu0 0.0
  %203 = vmatpush1.msra.mxu0 0.0
  %204 = vmatprep.subr.mxu0 0.0
  %205 = vmatpush1.msra.mxu0 0.0
  %206 = vmatprep.subr.mxu0 0.0
  %207 = vmatpush1.msra.mxu0 0.0
  %208 = vmatprep.subr.mxu0 0.0
  %209 = vmatpush1.msra.mxu0 0.0
  %210 = vmatprep.subr.mxu0 0.0
  %211 = vmatpush1.msra.mxu0 0.0
  %212 = vmatprep.subr.mxu0 0.0
  %213 = vmatpush1.msra.mxu0 0.0
  %214 = vmatprep.subr.mxu0 0.0
  %215 = vmatpush1.msra.mxu0 0.0
  %216 = vmatprep.subr.mxu0 0.0
  %217 = vmatpush1.msra.mxu0 0.0
  %218 = vmatprep.subr.mxu0 0.0
  %219 = vmatpush1.msra.mxu0 0.0
  %220 = vmatprep.subr.mxu0 0.0
  %221 = vmatpush1.msra.mxu0 0.0
  %222 = vmatprep.subr.mxu0 0.0
  %v223 = vand.u32 %v38, 4294901760
  %v224 = vsub.f32 %v38, %v223
  %225 = vmatpush1.msra.mxu0 %v224
  %226 = vmatprep.subr.mxu0 0.0
  %227 = vmatpush2.msra.mxu0 0.0
  %228 = vmatprep.subr.mxu0 0.0
  %229 = vmatpush2.msra.mxu0 0.0
  %230 = vmatprep.subr.mxu0 0.0
  %231 = vmatpush2.msra.mxu0 0.0
  %232 = vmatprep.subr.mxu0 0.0
  %233 = vmatpush2.msra.mxu0 0.0
  %234 = vmatprep.subr.mxu0 0.0
  %235 = vmatpush2.msra.mxu0 0.0
  %236 = vmatprep.subr.mxu0 0.0
  %237 = vmatpush2.msra.mxu0 0.0
  %238 = vmatprep.subr.mxu0 0.0
  %239 = vmatpush2.msra.mxu0 0.0
  %240 = vmatprep.subr.mxu0 0.0
  %241 = vmatpush2.msra.mxu0 0.0
  %242 = vmatprep.subr.mxu0 0.0
  %243 = vmatpush2.msra.mxu0 0.0
  %244 = vmatprep.subr.mxu0 0.0
  %245 = vmatpush2.msra.mxu0 0.0
  %246 = vmatprep.subr.mxu0 0.0
  %247 = vmatpush2.msra.mxu0 0.0
  %248 = vmatprep.subr.mxu0 0.0
  %249 = vmatpush2.msra.mxu0 0.0
  %250 = vmatprep.subr.mxu0 0.0
  %251 = vmatpush2.msra.mxu0 0.0
  %252 = vmatprep.subr.mxu0 0.0
  %253 = vmatpush2.msra.mxu0 0.0
  %254 = vmatprep.subr.mxu0 0.0
  %255 = vmatpush2.msra.mxu0 0.0
  %256 = vmatprep.subr.mxu0 0.0
  %257 = vmatpush2.msra.mxu0 0.0
  %258 = vmatprep.mubr.f32.mxu0 0.0
  %v259 = vand.u32 %v34, 4294901760
  %v260 = vsub.f32 %v34, %v259
  %261 = vmatmul.mubr.f32.gmra.mxu0 %v260
  %v262 = vpop.f32.mrf.mxu0
  %v263 = vadd.f32 %v189, %v262
  %v264 = vpop.f32.mrf.mxu0
  %265 = vdwg.mxu0
  %266 = vmatprep.subr.mxu0 0.0
  %267 = vmatpush1.msra.mxu0 0.0
  %268 = vmatprep.subr.mxu0 0.0
  %269 = vmatpush1.msra.mxu0 0.0
  %270 = vmatprep.subr.mxu0 0.0
  %271 = vmatpush1.msra.mxu0 0.0
  %272 = vmatprep.subr.mxu0 0.0
  %273 = vmatpush1.msra.mxu0 0.0
  %274 = vmatprep.subr.mxu0 0.0
  %275 = vmatpush1.msra.mxu0 0.0
  %276 = vmatprep.subr.mxu0 0.0
  %277 = vmatpush1.msra.mxu0 0.0
  %278 = vmatprep.subr.mxu0 0.0
  %279 = vmatpush1.msra.mxu0 0.0
  %280 = vmatprep.subr.mxu0 0.0
  %281 = vmatpush1.msra.mxu0 0.0
  %282 = vmatprep.subr.mxu0 0.0
  %283 = vmatpush1.msra.mxu0 0.0
  %284 = vmatprep.subr.mxu0 0.0
  %285 = vmatpush1.msra.mxu0 0.0
  %286 = vmatprep.subr.mxu0 0.0
  %287 = vmatpush1.msra.mxu0 0.0
  %288 = vmatprep.subr.mxu0 0.0
  %289 = vmatpush1.msra.mxu0 0.0
  %290 = vmatprep.subr.mxu0 0.0
  %291 = vmatpush1.msra.mxu0 0.0
  %292 = vmatprep.subr.mxu0 0.0
  %293 = vmatpush1.msra.mxu0 0.0
  %294 = vmatprep.subr.mxu0 0.0
  %295 = vmatpush1.msra.mxu0 0.0
  %296 = vmatprep.subr.mxu0 0.0
  %v297 = vand.u32 %v38, 4294901760
  %298 = vmatpush1.msra.mxu0 %v297
  %299 = vmatprep.subr.mxu0 0.0
  %300 = vmatpush2.msra.mxu0 0.0
  %301 = vmatprep.subr.mxu0 0.0
  %302 = vmatpush2.msra.mxu0 0.0
  %303 = vmatprep.subr.mxu0 0.0
  %304 = vmatpush2.msra.mxu0 0.0
  %305 = vmatprep.subr.mxu0 0.0
  %306 = vmatpush2.msra.mxu0 0.0
  %307 = vmatprep.subr.mxu0 0.0
  %308 = vmatpush2.msra.mxu0 0.0
  %309 = vmatprep.subr.mxu0 0.0
  %310 = vmatpush2.msra.mxu0 0.0
  %311 = vmatprep.subr.mxu0 0.0
  %312 = vmatpush2.msra.mxu0 0.0
  %313 = vmatprep.subr.mxu0 0.0
  %314 = vmatpush2.msra.mxu0 0.0
  %315 = vmatprep.subr.mxu0 0.0
  %316 = vmatpush2.msra.mxu0 0.0
  %317 = vmatprep.subr.mxu0 0.0
  %318 = vmatpush2.msra.mxu0 0.0
  %319 = vmatprep.subr.mxu0 0.0
  %320 = vmatpush2.msra.mxu0 0.0
  %321 = vmatprep.subr.mxu0 0.0
  %322 = vmatpush2.msra.mxu0 0.0
  %323 = vmatprep.subr.mxu0 0.0
  %324 = vmatpush2.msra.mxu0 0.0
  %325 = vmatprep.subr.mxu0 0.0
  %326 = vmatpush2.msra.mxu0 0.0
  %327 = vmatprep.subr.mxu0 0.0
  %328 = vmatpush2.msra.mxu0 0.0
  %329 = vmatprep.subr.mxu0 0.0
  %330 = vmatpush2.msra.mxu0 0.0
  %331 = vmatprep.mubr.f32.mxu0 0.0
  %v332 = vand.u32 %v34, 4294901760
  %v333 = vsub.f32 %v34, %v332
  %v334 = vand.u32 %v333, 4294901760
  %335 = vmatmul.mubr.f32.gmra.mxu0 %v334
  %v336 = vpop.f32.mrf.mxu0
  %v337 = vadd.f32 %v263, %v336
  %v338 = vpop.f32.mrf.mxu0
  %339 = vdwg.mxu0
  %340 = vmatprep.subr.mxu0 0.0
  %341 = vmatpush1.msra.mxu0 0.0
  %342 = vmatprep.subr.mxu0 0.0
  %343 = vmatpush1.msra.mxu0 0.0
  %344 = vmatprep.subr.mxu0 0.0
  %345 = vmatpush1.msra.mxu0 0.0
  %346 = vmatprep.subr.mxu0 0.0
  %347 = vmatpush1.msra.mxu0 0.0
  %348 = vmatprep.subr.mxu0 0.0
  %349 = vmatpush1.msra.mxu0 0.0
  %350 = vmatprep.subr.mxu0 0.0
  %351 = vmatpush1.msra.mxu0 0.0
  %352 = vmatprep.subr.mxu0 0.0
  %353 = vmatpush1.msra.mxu0 0.0
  %354 = vmatprep.subr.mxu0 0.0
  %355 = vmatpush1.msra.mxu0 0.0
  %356 = vmatprep.subr.mxu0 0.0
  %357 = vmatpush1.msra.mxu0 0.0
  %358 = vmatprep.subr.mxu0 0.0
  %359 = vmatpush1.msra.mxu0 0.0
  %360 = vmatprep.subr.mxu0 0.0
  %361 = vmatpush1.msra.mxu0 0.0
  %362 = vmatprep.subr.mxu0 0.0
  %363 = vmatpush1.msra.mxu0 0.0
  %364 = vmatprep.subr.mxu0 0.0
  %365 = vmatpush1.msra.mxu0 0.0
  %366 = vmatprep.subr.mxu0 0.0
  %367 = vmatpush1.msra.mxu0 0.0
  %368 = vmatprep.subr.mxu0 0.0
  %369 = vmatpush1.msra.mxu0 0.0
  %370 = vmatprep.subr.mxu0 0.0
  %v371 = vand.u32 %v38, 4294901760
  %v372 = vsub.f32 %v38, %v371
  %v373 = vand.u32 %v372, 4294901760
  %374 = vmatpush1.msra.mxu0 %v373
  %375 = vmatprep.subr.mxu0 0.0
  %376 = vmatpush2.msra.mxu0 0.0
  %377 = vmatprep.subr.mxu0 0.0
  %378 = vmatpush2.msra.mxu0 0.0
  %379 = vmatprep.subr.mxu0 0.0
  %380 = vmatpush2.msra.mxu0 0.0
  %381 = vmatprep.subr.mxu0 0.0
  %382 = vmatpush2.msra.mxu0 0.0
  %383 = vmatprep.subr.mxu0 0.0
  %384 = vmatpush2.msra.mxu0 0.0
  %385 = vmatprep.subr.mxu0 0.0
  %386 = vmatpush2.msra.mxu0 0.0
  %387 = vmatprep.subr.mxu0 0.0
  %388 = vmatpush2.msra.mxu0 0.0
  %389 = vmatprep.subr.mxu0 0.0
  %390 = vmatpush2.msra.mxu0 0.0
  %391 = vmatprep.subr.mxu0 0.0
  %392 = vmatpush2.msra.mxu0 0.0
  %393 = vmatprep.subr.mxu0 0.0
  %394 = vmatpush2.msra.mxu0 0.0
  %395 = vmatprep.subr.mxu0 0.0
  %396 = vmatpush2.msra.mxu0 0.0
  %397 = vmatprep.subr.mxu0 0.0
  %398 = vmatpush2.msra.mxu0 0.0
  %399 = vmatprep.subr.mxu0 0.0
  %400 = vmatpush2.msra.mxu0 0.0
  %401 = vmatprep.subr.mxu0 0.0
  %402 = vmatpush2.msra.mxu0 0.0
  %403 = vmatprep.subr.mxu0 0.0
  %404 = vmatpush2.msra.mxu0 0.0
  %405 = vmatprep.subr.mxu0 0.0
  %406 = vmatpush2.msra.mxu0 0.0
  %407 = vmatprep.mubr.f32.mxu0 0.0
  %v408 = vand.u32 %v34, 4294901760
  %409 = vmatmul.mubr.f32.gmra.mxu0 %v408
  %v410 = vpop.f32.mrf.mxu0
  %v411 = vadd.f32 %v337, %v410
  %v412 = vpop.f32.mrf.mxu0
  %413 = vdwg.mxu0
  %414 = vmatprep.subr.mxu0 0.0
  %415 = vmatpush1.msra.mxu0 0.0
  %416 = vmatprep.subr.mxu0 0.0
  %417 = vmatpush1.msra.mxu0 0.0
  %418 = vmatprep.subr.mxu0 0.0
  %419 = vmatpush1.msra.mxu0 0.0
  %420 = vmatprep.subr.mxu0 0.0
  %421 = vmatpush1.msra.mxu0 0.0
  %422 = vmatprep.subr.mxu0 0.0
  %423 = vmatpush1.msra.mxu0 0.0
  %424 = vmatprep.subr.mxu0 0.0
  %425 = vmatpush1.msra.mxu0 0.0
  %426 = vmatprep.subr.mxu0 0.0
  %427 = vmatpush1.msra.mxu0 0.0
  %428 = vmatprep.subr.mxu0 0.0
  %429 = vmatpush1.msra.mxu0 0.0
  %430 = vmatprep.subr.mxu0 0.0
  %431 = vmatpush1.msra.mxu0 0.0
  %432 = vmatprep.subr.mxu0 0.0
  %433 = vmatpush1.msra.mxu0 0.0
  %434 = vmatprep.subr.mxu0 0.0
  %435 = vmatpush1.msra.mxu0 0.0
  %436 = vmatprep.subr.mxu0 0.0
  %437 = vmatpush1.msra.mxu0 0.0
  %438 = vmatprep.subr.mxu0 0.0
  %439 = vmatpush1.msra.mxu0 0.0
  %440 = vmatprep.subr.mxu0 0.0
  %441 = vmatpush1.msra.mxu0 0.0
  %442 = vmatprep.subr.mxu0 0.0
  %443 = vmatpush1.msra.mxu0 0.0
  %444 = vmatprep.subr.mxu0 0.0
  %v445 = vand.u32 %v38, 4294901760
  %446 = vmatpush1.msra.mxu0 %v445
  %447 = vmatprep.subr.mxu0 0.0
  %448 = vmatpush2.msra.mxu0 0.0
  %449 = vmatprep.subr.mxu0 0.0
  %450 = vmatpush2.msra.mxu0 0.0
  %451 = vmatprep.subr.mxu0 0.0
  %452 = vmatpush2.msra.mxu0 0.0
  %453 = vmatprep.subr.mxu0 0.0
  %454 = vmatpush2.msra.mxu0 0.0
  %455 = vmatprep.subr.mxu0 0.0
  %456 = vmatpush2.msra.mxu0 0.0
  %457 = vmatprep.subr.mxu0 0.0
  %458 = vmatpush2.msra.mxu0 0.0
  %459 = vmatprep.subr.mxu0 0.0
  %460 = vmatpush2.msra.mxu0 0.0
  %461 = vmatprep.subr.mxu0 0.0
  %462 = vmatpush2.msra.mxu0 0.0
  %463 = vmatprep.subr.mxu0 0.0
  %464 = vmatpush2.msra.mxu0 0.0
  %465 = vmatprep.subr.mxu0 0.0
  %466 = vmatpush2.msra.mxu0 0.0
  %467 = vmatprep.subr.mxu0 0.0
  %468 = vmatpush2.msra.mxu0 0.0
  %469 = vmatprep.subr.mxu0 0.0
  %470 = vmatpush2.msra.mxu0 0.0
  %471 = vmatprep.subr.mxu0 0.0
  %472 = vmatpush2.msra.mxu0 0.0
  %473 = vmatprep.subr.mxu0 0.0
  %474 = vmatpush2.msra.mxu0 0.0
  %475 = vmatprep.subr.mxu0 0.0
  %476 = vmatpush2.msra.mxu0 0.0
  %477 = vmatprep.subr.mxu0 0.0
  %478 = vmatpush2.msra.mxu0 0.0
  %479 = vmatprep.mubr.f32.mxu0 0.0
  %v480 = vand.u32 %v34, 4294901760
  %481 = vmatmul.mubr.f32.gmra.mxu0 %v480
  %v482 = vpop.f32.mrf.mxu0
  %v483 = vadd.f32 %v411, %v482
  %v484 = vpop.f32.mrf.mxu0
  %485 = vdwg.mxu0
  %v486 = vld [vmem:[%s1] sm:$0xff]
  %v487 = vld [vmem:[%s3] sm:$0x1]
  %489 = vset.pattern.permute.xlu0 0
  %490 = vperm.xlu0 %489, %v486
  %v491 = vpop.permute.xlu0 %490
  %v494 = vlaneseq
  %v495 = vshrl.u32 %v494, 7
  %v496 = vsub.s32 0, %v495
  %v497 = vrot.slane %v487, %v496
  %v499 = vadd.f32 %v491, %v497
  %v500 = vsub.f32 %v499, %v483
  %v501 = vmax.f32 %v500, 0.0
  %v502 = vrsqrt.pop %v501
  %v503 = vmul.f32 %v501, %v502
  %vm504 = vcmp.eq.f32.partialorder %v501, inf
  %v505 = vsel %vm504, %v501, %v503
  %vm506 = vcmp.eq.f32.partialorder %v501, 0.0
  %v507 = vand.u32 %v501, 2147483648
  %v508 = vsel %vm506, %v507, %v505
  %v509 = vadd.f32 %v508, 1.0
  %v510 = vmul.f32 %v501, 0.33333334
  %v511 = vadd.f32 %v509, %v510
  %v512 = vsub.f32 0.0, %v508
  %v513 = vmul.f32 %v512, 1.442695
  %v514 = vpow.pop %v513
  %v515 = vmul.f32 %v511, %v514
  %v516 = vld [vmem:[%s6] sm:$0xff]
  %v517 = vld [vmem:[%s4] sm:$0xff]
  %v518 = vld [vmem:[%s4 + $0x8] sm:$0xff]
  %v519 = vld [vmem:[%s4 + $0x10] sm:$0xff]
  %v520 = vld [vmem:[%s4 + $0x18] sm:$0xff]
  %v521 = vld [vmem:[%s4 + $0x20] sm:$0xff]
  %v522 = vld [vmem:[%s4 + $0x28] sm:$0xff]
  %v523 = vld [vmem:[%s4 + $0x30] sm:$0xff]
  %v524 = vld [vmem:[%s4 + $0x38] sm:$0xff]
  %v525 = vld [vmem:[%s4 + $0x40] sm:$0xff]
  %v526 = vld [vmem:[%s4 + $0x48] sm:$0xff]
  %v527 = vld [vmem:[%s4 + $0x50] sm:$0xff]
  %v528 = vld [vmem:[%s4 + $0x58] sm:$0xff]
  %v529 = vld [vmem:[%s4 + $0x60] sm:$0xff]
  %v530 = vld [vmem:[%s4 + $0x68] sm:$0xff]
  %v531 = vld [vmem:[%s4 + $0x70] sm:$0xff]
  %v532 = vld [vmem:[%s4 + $0x78] sm:$0xff]
  %533 = vmatprep.subr.mxu0 0.0
  %v534 = vand.u32 %v532, 4294901760
  %535 = vmatpush1.msra.mxu0 %v534
  %536 = vmatprep.subr.mxu0 0.0
  %v537 = vand.u32 %v531, 4294901760
  %538 = vmatpush1.msra.mxu0 %v537
  %539 = vmatprep.subr.mxu0 0.0
  %v540 = vand.u32 %v530, 4294901760
  %541 = vmatpush1.msra.mxu0 %v540
  %542 = vmatprep.subr.mxu0 0.0
  %v543 = vand.u32 %v529, 4294901760
  %544 = vmatpush1.msra.mxu0 %v543
  %545 = vmatprep.subr.mxu0 0.0
  %v546 = vand.u32 %v528, 4294901760
  %547 = vmatpush1.msra.mxu0 %v546
  %548 = vmatprep.subr.mxu0 0.0
  %v549 = vand.u32 %v527, 4294901760
  %550 = vmatpush1.msra.mxu0 %v549
  %551 = vmatprep.subr.mxu0 0.0
  %v552 = vand.u32 %v526, 4294901760
  %553 = vmatpush1.msra.mxu0 %v552
  %554 = vmatprep.subr.mxu0 0.0
  %v555 = vand.u32 %v525, 4294901760
  %556 = vmatpush1.msra.mxu0 %v555
  %557 = vmatprep.subr.mxu0 0.0
  %v558 = vand.u32 %v524, 4294901760
  %559 = vmatpush1.msra.mxu0 %v558
  %560 = vmatprep.subr.mxu0 0.0
  %v561 = vand.u32 %v523, 4294901760
  %562 = vmatpush1.msra.mxu0 %v561
  %563 = vmatprep.subr.mxu0 0.0
  %v564 = vand.u32 %v522, 4294901760
  %565 = vmatpush1.msra.mxu0 %v564
  %566 = vmatprep.subr.mxu0 0.0
  %v567 = vand.u32 %v521, 4294901760
  %568 = vmatpush1.msra.mxu0 %v567
  %569 = vmatprep.subr.mxu0 0.0
  %v570 = vand.u32 %v520, 4294901760
  %571 = vmatpush1.msra.mxu0 %v570
  %572 = vmatprep.subr.mxu0 0.0
  %v573 = vand.u32 %v519, 4294901760
  %574 = vmatpush1.msra.mxu0 %v573
  %575 = vmatprep.subr.mxu0 0.0
  %v576 = vand.u32 %v518, 4294901760
  %577 = vmatpush1.msra.mxu0 %v576
  %578 = vmatprep.subr.mxu0 0.0
  %v579 = vand.u32 %v517, 4294901760
  %580 = vmatpush1.msra.mxu0 %v579
  %581 = vmatprep.subr.mxu0 0.0
  %582 = vmatpush2.msra.mxu0 0.0
  %583 = vmatprep.subr.mxu0 0.0
  %584 = vmatpush2.msra.mxu0 0.0
  %585 = vmatprep.subr.mxu0 0.0
  %586 = vmatpush2.msra.mxu0 0.0
  %587 = vmatprep.subr.mxu0 0.0
  %588 = vmatpush2.msra.mxu0 0.0
  %589 = vmatprep.subr.mxu0 0.0
  %590 = vmatpush2.msra.mxu0 0.0
  %591 = vmatprep.subr.mxu0 0.0
  %592 = vmatpush2.msra.mxu0 0.0
  %593 = vmatprep.subr.mxu0 0.0
  %594 = vmatpush2.msra.mxu0 0.0
  %595 = vmatprep.subr.mxu0 0.0
  %596 = vmatpush2.msra.mxu0 0.0
  %597 = vmatprep.subr.mxu0 0.0
  %598 = vmatpush2.msra.mxu0 0.0
  %599 = vmatprep.subr.mxu0 0.0
  %600 = vmatpush2.msra.mxu0 0.0
  %601 = vmatprep.subr.mxu0 0.0
  %602 = vmatpush2.msra.mxu0 0.0
  %603 = vmatprep.subr.mxu0 0.0
  %604 = vmatpush2.msra.mxu0 0.0
  %605 = vmatprep.subr.mxu0 0.0
  %606 = vmatpush2.msra.mxu0 0.0
  %607 = vmatprep.subr.mxu0 0.0
  %608 = vmatpush2.msra.mxu0 0.0
  %609 = vmatprep.subr.mxu0 0.0
  %610 = vmatpush2.msra.mxu0 0.0
  %611 = vmatprep.subr.mxu0 0.0
  %612 = vmatpush2.msra.mxu0 0.0
  %613 = vmatprep.mubr.f32.mxu0 0.0
  %v614 = vand.u32 %v515, 4294901760
  %v615 = vsub.f32 %v515, %v614
  %v616 = vand.u32 %v615, 4294901760
  %v617 = vsub.f32 %v615, %v616
  %v618 = vand.u32 %v617, 4294901760
  %619 = vmatmul.mubr.f32.gmra.mxu0 %v618
  %v620 = vpop.f32.mrf.mxu0
  %v621 = vadd.f32 0.0, %v620
  %v622 = vpop.f32.mrf.mxu0
  %623 = vdwg.mxu0
  %624 = vmatprep.subr.mxu0 0.0
  %v625 = vand.u32 %v532, 4294901760
  %v626 = vsub.f32 %v532, %v625
  %v627 = vand.u32 %v626, 4294901760
  %v628 = vsub.f32 %v626, %v627
  %v629 = vand.u32 %v628, 4294901760
  %630 = vmatpush1.msra.mxu0 %v629
  %631 = vmatprep.subr.mxu0 0.0
  %v632 = vand.u32 %v531, 4294901760
  %v633 = vsub.f32 %v531, %v632
  %v634 = vand.u32 %v633, 4294901760
  %v635 = vsub.f32 %v633, %v634
  %v636 = vand.u32 %v635, 4294901760
  %637 = vmatpush1.msra.mxu0 %v636
  %638 = vmatprep.subr.mxu0 0.0
  %v639 = vand.u32 %v530, 4294901760
  %v640 = vsub.f32 %v530, %v639
  %v641 = vand.u32 %v640, 4294901760
  %v642 = vsub.f32 %v640, %v641
  %v643 = vand.u32 %v642, 4294901760
  %644 = vmatpush1.msra.mxu0 %v643
  %645 = vmatprep.subr.mxu0 0.0
  %v646 = vand.u32 %v529, 4294901760
  %v647 = vsub.f32 %v529, %v646
  %v648 = vand.u32 %v647, 4294901760
  %v649 = vsub.f32 %v647, %v648
  %v650 = vand.u32 %v649, 4294901760
  %651 = vmatpush1.msra.mxu0 %v650
  %652 = vmatprep.subr.mxu0 0.0
  %v653 = vand.u32 %v528, 4294901760
  %v654 = vsub.f32 %v528, %v653
  %v655 = vand.u32 %v654, 4294901760
  %v656 = vsub.f32 %v654, %v655
  %v657 = vand.u32 %v656, 4294901760
  %658 = vmatpush1.msra.mxu0 %v657
  %659 = vmatprep.subr.mxu0 0.0
  %v660 = vand.u32 %v527, 4294901760
  %v661 = vsub.f32 %v527, %v660
  %v662 = vand.u32 %v661, 4294901760
  %v663 = vsub.f32 %v661, %v662
  %v664 = vand.u32 %v663, 4294901760
  %665 = vmatpush1.msra.mxu0 %v664
  %666 = vmatprep.subr.mxu0 0.0
  %v667 = vand.u32 %v526, 4294901760
  %v668 = vsub.f32 %v526, %v667
  %v669 = vand.u32 %v668, 4294901760
  %v670 = vsub.f32 %v668, %v669
  %v671 = vand.u32 %v670, 4294901760
  %672 = vmatpush1.msra.mxu0 %v671
  %673 = vmatprep.subr.mxu0 0.0
  %v674 = vand.u32 %v525, 4294901760
  %v675 = vsub.f32 %v525, %v674
  %v676 = vand.u32 %v675, 4294901760
  %v677 = vsub.f32 %v675, %v676
  %v678 = vand.u32 %v677, 4294901760
  %679 = vmatpush1.msra.mxu0 %v678
  %680 = vmatprep.subr.mxu0 0.0
  %v681 = vand.u32 %v524, 4294901760
  %v682 = vsub.f32 %v524, %v681
  %v683 = vand.u32 %v682, 4294901760
  %v684 = vsub.f32 %v682, %v683
  %v685 = vand.u32 %v684, 4294901760
  %686 = vmatpush1.msra.mxu0 %v685
  %687 = vmatprep.subr.mxu0 0.0
  %v688 = vand.u32 %v523, 4294901760
  %v689 = vsub.f32 %v523, %v688
  %v690 = vand.u32 %v689, 4294901760
  %v691 = vsub.f32 %v689, %v690
  %v692 = vand.u32 %v691, 4294901760
  %693 = vmatpush1.msra.mxu0 %v692
  %694 = vmatprep.subr.mxu0 0.0
  %v695 = vand.u32 %v522, 4294901760
  %v696 = vsub.f32 %v522, %v695
  %v697 = vand.u32 %v696, 4294901760
  %v698 = vsub.f32 %v696, %v697
  %v699 = vand.u32 %v698, 4294901760
  %700 = vmatpush1.msra.mxu0 %v699
  %701 = vmatprep.subr.mxu0 0.0
  %v702 = vand.u32 %v521, 4294901760
  %v703 = vsub.f32 %v521, %v702
  %v704 = vand.u32 %v703, 4294901760
  %v705 = vsub.f32 %v703, %v704
  %v706 = vand.u32 %v705, 4294901760
  %707 = vmatpush1.msra.mxu0 %v706
  %708 = vmatprep.subr.mxu0 0.0
  %v709 = vand.u32 %v520, 4294901760
  %v710 = vsub.f32 %v520, %v709
  %v711 = vand.u32 %v710, 4294901760
  %v712 = vsub.f32 %v710, %v711
  %v713 = vand.u32 %v712, 4294901760
  %714 = vmatpush1.msra.mxu0 %v713
  %715 = vmatprep.subr.mxu0 0.0
  %v716 = vand.u32 %v519, 4294901760
  %v717 = vsub.f32 %v519, %v716
  %v718 = vand.u32 %v717, 4294901760
  %v719 = vsub.f32 %v717, %v718
  %v720 = vand.u32 %v719, 4294901760
  %721 = vmatpush1.msra.mxu0 %v720
  %722 = vmatprep.subr.mxu0 0.0
  %v723 = vand.u32 %v518, 4294901760
  %v724 = vsub.f32 %v518, %v723
  %v725 = vand.u32 %v724, 4294901760
  %v726 = vsub.f32 %v724, %v725
  %v727 = vand.u32 %v726, 4294901760
  %728 = vmatpush1.msra.mxu0 %v727
  %729 = vmatprep.subr.mxu0 0.0
  %v730 = vand.u32 %v517, 4294901760
  %v731 = vsub.f32 %v517, %v730
  %v732 = vand.u32 %v731, 4294901760
  %v733 = vsub.f32 %v731, %v732
  %v734 = vand.u32 %v733, 4294901760
  %735 = vmatpush1.msra.mxu0 %v734
  %736 = vmatprep.subr.mxu0 0.0
  %737 = vmatpush2.msra.mxu0 0.0
  %738 = vmatprep.subr.mxu0 0.0
  %739 = vmatpush2.msra.mxu0 0.0
  %740 = vmatprep.subr.mxu0 0.0
  %741 = vmatpush2.msra.mxu0 0.0
  %742 = vmatprep.subr.mxu0 0.0
  %743 = vmatpush2.msra.mxu0 0.0
  %744 = vmatprep.subr.mxu0 0.0
  %745 = vmatpush2.msra.mxu0 0.0
  %746 = vmatprep.subr.mxu0 0.0
  %747 = vmatpush2.msra.mxu0 0.0
  %748 = vmatprep.subr.mxu0 0.0
  %749 = vmatpush2.msra.mxu0 0.0
  %750 = vmatprep.subr.mxu0 0.0
  %751 = vmatpush2.msra.mxu0 0.0
  %752 = vmatprep.subr.mxu0 0.0
  %753 = vmatpush2.msra.mxu0 0.0
  %754 = vmatprep.subr.mxu0 0.0
  %755 = vmatpush2.msra.mxu0 0.0
  %756 = vmatprep.subr.mxu0 0.0
  %757 = vmatpush2.msra.mxu0 0.0
  %758 = vmatprep.subr.mxu0 0.0
  %759 = vmatpush2.msra.mxu0 0.0
  %760 = vmatprep.subr.mxu0 0.0
  %761 = vmatpush2.msra.mxu0 0.0
  %762 = vmatprep.subr.mxu0 0.0
  %763 = vmatpush2.msra.mxu0 0.0
  %764 = vmatprep.subr.mxu0 0.0
  %765 = vmatpush2.msra.mxu0 0.0
  %766 = vmatprep.subr.mxu0 0.0
  %767 = vmatpush2.msra.mxu0 0.0
  %768 = vmatprep.mubr.f32.mxu0 0.0
  %v769 = vand.u32 %v515, 4294901760
  %770 = vmatmul.mubr.f32.gmra.mxu0 %v769
  %v771 = vpop.f32.mrf.mxu0
  %v772 = vadd.f32 %v621, %v771
  %v773 = vpop.f32.mrf.mxu0
  %774 = vdwg.mxu0
  %775 = vmatprep.subr.mxu0 0.0
  %v776 = vand.u32 %v532, 4294901760
  %v777 = vsub.f32 %v532, %v776
  %778 = vmatpush1.msra.mxu0 %v777
  %779 = vmatprep.subr.mxu0 0.0
  %v780 = vand.u32 %v531, 4294901760
  %v781 = vsub.f32 %v531, %v780
  %782 = vmatpush1.msra.mxu0 %v781
  %783 = vmatprep.subr.mxu0 0.0
  %v784 = vand.u32 %v530, 4294901760
  %v785 = vsub.f32 %v530, %v784
  %786 = vmatpush1.msra.mxu0 %v785
  %787 = vmatprep.subr.mxu0 0.0
  %v788 = vand.u32 %v529, 4294901760
  %v789 = vsub.f32 %v529, %v788
  %790 = vmatpush1.msra.mxu0 %v789
  %791 = vmatprep.subr.mxu0 0.0
  %v792 = vand.u32 %v528, 4294901760
  %v793 = vsub.f32 %v528, %v792
  %794 = vmatpush1.msra.mxu0 %v793
  %795 = vmatprep.subr.mxu0 0.0
  %v796 = vand.u32 %v527, 4294901760
  %v797 = vsub.f32 %v527, %v796
  %798 = vmatpush1.msra.mxu0 %v797
  %799 = vmatprep.subr.mxu0 0.0
  %v800 = vand.u32 %v526, 4294901760
  %v801 = vsub.f32 %v526, %v800
  %802 = vmatpush1.msra.mxu0 %v801
  %803 = vmatprep.subr.mxu0 0.0
  %v804 = vand.u32 %v525, 4294901760
  %v805 = vsub.f32 %v525, %v804
  %806 = vmatpush1.msra.mxu0 %v805
  %807 = vmatprep.subr.mxu0 0.0
  %v808 = vand.u32 %v524, 4294901760
  %v809 = vsub.f32 %v524, %v808
  %810 = vmatpush1.msra.mxu0 %v809
  %811 = vmatprep.subr.mxu0 0.0
  %v812 = vand.u32 %v523, 4294901760
  %v813 = vsub.f32 %v523, %v812
  %814 = vmatpush1.msra.mxu0 %v813
  %815 = vmatprep.subr.mxu0 0.0
  %v816 = vand.u32 %v522, 4294901760
  %v817 = vsub.f32 %v522, %v816
  %818 = vmatpush1.msra.mxu0 %v817
  %819 = vmatprep.subr.mxu0 0.0
  %v820 = vand.u32 %v521, 4294901760
  %v821 = vsub.f32 %v521, %v820
  %822 = vmatpush1.msra.mxu0 %v821
  %823 = vmatprep.subr.mxu0 0.0
  %v824 = vand.u32 %v520, 4294901760
  %v825 = vsub.f32 %v520, %v824
  %826 = vmatpush1.msra.mxu0 %v825
  %827 = vmatprep.subr.mxu0 0.0
  %v828 = vand.u32 %v519, 4294901760
  %v829 = vsub.f32 %v519, %v828
  %830 = vmatpush1.msra.mxu0 %v829
  %831 = vmatprep.subr.mxu0 0.0
  %v832 = vand.u32 %v518, 4294901760
  %v833 = vsub.f32 %v518, %v832
  %834 = vmatpush1.msra.mxu0 %v833
  %835 = vmatprep.subr.mxu0 0.0
  %v836 = vand.u32 %v517, 4294901760
  %v837 = vsub.f32 %v517, %v836
  %838 = vmatpush1.msra.mxu0 %v837
  %839 = vmatprep.subr.mxu0 0.0
  %840 = vmatpush2.msra.mxu0 0.0
  %841 = vmatprep.subr.mxu0 0.0
  %842 = vmatpush2.msra.mxu0 0.0
  %843 = vmatprep.subr.mxu0 0.0
  %844 = vmatpush2.msra.mxu0 0.0
  %845 = vmatprep.subr.mxu0 0.0
  %846 = vmatpush2.msra.mxu0 0.0
  %847 = vmatprep.subr.mxu0 0.0
  %848 = vmatpush2.msra.mxu0 0.0
  %849 = vmatprep.subr.mxu0 0.0
  %850 = vmatpush2.msra.mxu0 0.0
  %851 = vmatprep.subr.mxu0 0.0
  %852 = vmatpush2.msra.mxu0 0.0
  %853 = vmatprep.subr.mxu0 0.0
  %854 = vmatpush2.msra.mxu0 0.0
  %855 = vmatprep.subr.mxu0 0.0
  %856 = vmatpush2.msra.mxu0 0.0
  %857 = vmatprep.subr.mxu0 0.0
  %858 = vmatpush2.msra.mxu0 0.0
  %859 = vmatprep.subr.mxu0 0.0
  %860 = vmatpush2.msra.mxu0 0.0
  %861 = vmatprep.subr.mxu0 0.0
  %862 = vmatpush2.msra.mxu0 0.0
  %863 = vmatprep.subr.mxu0 0.0
  %864 = vmatpush2.msra.mxu0 0.0
  %865 = vmatprep.subr.mxu0 0.0
  %866 = vmatpush2.msra.mxu0 0.0
  %867 = vmatprep.subr.mxu0 0.0
  %868 = vmatpush2.msra.mxu0 0.0
  %869 = vmatprep.subr.mxu0 0.0
  %870 = vmatpush2.msra.mxu0 0.0
  %871 = vmatprep.mubr.f32.mxu0 0.0
  %v872 = vand.u32 %v515, 4294901760
  %v873 = vsub.f32 %v515, %v872
  %874 = vmatmul.mubr.f32.gmra.mxu0 %v873
  %v875 = vpop.f32.mrf.mxu0
  %v876 = vadd.f32 %v772, %v875
  %v877 = vpop.f32.mrf.mxu0
  %878 = vdwg.mxu0
  %879 = vmatprep.subr.mxu0 0.0
  %v880 = vand.u32 %v532, 4294901760
  %881 = vmatpush1.msra.mxu0 %v880
  %882 = vmatprep.subr.mxu0 0.0
  %v883 = vand.u32 %v531, 4294901760
  %884 = vmatpush1.msra.mxu0 %v883
  %885 = vmatprep.subr.mxu0 0.0
  %v886 = vand.u32 %v530, 4294901760
  %887 = vmatpush1.msra.mxu0 %v886
  %888 = vmatprep.subr.mxu0 0.0
  %v889 = vand.u32 %v529, 4294901760
  %890 = vmatpush1.msra.mxu0 %v889
  %891 = vmatprep.subr.mxu0 0.0
  %v892 = vand.u32 %v528, 4294901760
  %893 = vmatpush1.msra.mxu0 %v892
  %894 = vmatprep.subr.mxu0 0.0
  %v895 = vand.u32 %v527, 4294901760
  %896 = vmatpush1.msra.mxu0 %v895
  %897 = vmatprep.subr.mxu0 0.0
  %v898 = vand.u32 %v526, 4294901760
  %899 = vmatpush1.msra.mxu0 %v898
  %900 = vmatprep.subr.mxu0 0.0
  %v901 = vand.u32 %v525, 4294901760
  %902 = vmatpush1.msra.mxu0 %v901
  %903 = vmatprep.subr.mxu0 0.0
  %v904 = vand.u32 %v524, 4294901760
  %905 = vmatpush1.msra.mxu0 %v904
  %906 = vmatprep.subr.mxu0 0.0
  %v907 = vand.u32 %v523, 4294901760
  %908 = vmatpush1.msra.mxu0 %v907
  %909 = vmatprep.subr.mxu0 0.0
  %v910 = vand.u32 %v522, 4294901760
  %911 = vmatpush1.msra.mxu0 %v910
  %912 = vmatprep.subr.mxu0 0.0
  %v913 = vand.u32 %v521, 4294901760
  %914 = vmatpush1.msra.mxu0 %v913
  %915 = vmatprep.subr.mxu0 0.0
  %v916 = vand.u32 %v520, 4294901760
  %917 = vmatpush1.msra.mxu0 %v916
  %918 = vmatprep.subr.mxu0 0.0
  %v919 = vand.u32 %v519, 4294901760
  %920 = vmatpush1.msra.mxu0 %v919
  %921 = vmatprep.subr.mxu0 0.0
  %v922 = vand.u32 %v518, 4294901760
  %923 = vmatpush1.msra.mxu0 %v922
  %924 = vmatprep.subr.mxu0 0.0
  %v925 = vand.u32 %v517, 4294901760
  %926 = vmatpush1.msra.mxu0 %v925
  %927 = vmatprep.subr.mxu0 0.0
  %928 = vmatpush2.msra.mxu0 0.0
  %929 = vmatprep.subr.mxu0 0.0
  %930 = vmatpush2.msra.mxu0 0.0
  %931 = vmatprep.subr.mxu0 0.0
  %932 = vmatpush2.msra.mxu0 0.0
  %933 = vmatprep.subr.mxu0 0.0
  %934 = vmatpush2.msra.mxu0 0.0
  %935 = vmatprep.subr.mxu0 0.0
  %936 = vmatpush2.msra.mxu0 0.0
  %937 = vmatprep.subr.mxu0 0.0
  %938 = vmatpush2.msra.mxu0 0.0
  %939 = vmatprep.subr.mxu0 0.0
  %940 = vmatpush2.msra.mxu0 0.0
  %941 = vmatprep.subr.mxu0 0.0
  %942 = vmatpush2.msra.mxu0 0.0
  %943 = vmatprep.subr.mxu0 0.0
  %944 = vmatpush2.msra.mxu0 0.0
  %945 = vmatprep.subr.mxu0 0.0
  %946 = vmatpush2.msra.mxu0 0.0
  %947 = vmatprep.subr.mxu0 0.0
  %948 = vmatpush2.msra.mxu0 0.0
  %949 = vmatprep.subr.mxu0 0.0
  %950 = vmatpush2.msra.mxu0 0.0
  %951 = vmatprep.subr.mxu0 0.0
  %952 = vmatpush2.msra.mxu0 0.0
  %953 = vmatprep.subr.mxu0 0.0
  %954 = vmatpush2.msra.mxu0 0.0
  %955 = vmatprep.subr.mxu0 0.0
  %956 = vmatpush2.msra.mxu0 0.0
  %957 = vmatprep.subr.mxu0 0.0
  %958 = vmatpush2.msra.mxu0 0.0
  %959 = vmatprep.mubr.f32.mxu0 0.0
  %v960 = vand.u32 %v515, 4294901760
  %v961 = vsub.f32 %v515, %v960
  %v962 = vand.u32 %v961, 4294901760
  %963 = vmatmul.mubr.f32.gmra.mxu0 %v962
  %v964 = vpop.f32.mrf.mxu0
  %v965 = vadd.f32 %v876, %v964
  %v966 = vpop.f32.mrf.mxu0
  %967 = vdwg.mxu0
  %968 = vmatprep.subr.mxu0 0.0
  %v969 = vand.u32 %v532, 4294901760
  %v970 = vsub.f32 %v532, %v969
  %v971 = vand.u32 %v970, 4294901760
  %972 = vmatpush1.msra.mxu0 %v971
  %973 = vmatprep.subr.mxu0 0.0
  %v974 = vand.u32 %v531, 4294901760
  %v975 = vsub.f32 %v531, %v974
  %v976 = vand.u32 %v975, 4294901760
  %977 = vmatpush1.msra.mxu0 %v976
  %978 = vmatprep.subr.mxu0 0.0
  %v979 = vand.u32 %v530, 4294901760
  %v980 = vsub.f32 %v530, %v979
  %v981 = vand.u32 %v980, 4294901760
  %982 = vmatpush1.msra.mxu0 %v981
  %983 = vmatprep.subr.mxu0 0.0
  %v984 = vand.u32 %v529, 4294901760
  %v985 = vsub.f32 %v529, %v984
  %v986 = vand.u32 %v985, 4294901760
  %987 = vmatpush1.msra.mxu0 %v986
  %988 = vmatprep.subr.mxu0 0.0
  %v989 = vand.u32 %v528, 4294901760
  %v990 = vsub.f32 %v528, %v989
  %v991 = vand.u32 %v990, 4294901760
  %992 = vmatpush1.msra.mxu0 %v991
  %993 = vmatprep.subr.mxu0 0.0
  %v994 = vand.u32 %v527, 4294901760
  %v995 = vsub.f32 %v527, %v994
  %v996 = vand.u32 %v995, 4294901760
  %997 = vmatpush1.msra.mxu0 %v996
  %998 = vmatprep.subr.mxu0 0.0
  %v999 = vand.u32 %v526, 4294901760
  %v1000 = vsub.f32 %v526, %v999
  %v1001 = vand.u32 %v1000, 4294901760
  %1002 = vmatpush1.msra.mxu0 %v1001
  %1003 = vmatprep.subr.mxu0 0.0
  %v1004 = vand.u32 %v525, 4294901760
  %v1005 = vsub.f32 %v525, %v1004
  %v1006 = vand.u32 %v1005, 4294901760
  %1007 = vmatpush1.msra.mxu0 %v1006
  %1008 = vmatprep.subr.mxu0 0.0
  %v1009 = vand.u32 %v524, 4294901760
  %v1010 = vsub.f32 %v524, %v1009
  %v1011 = vand.u32 %v1010, 4294901760
  %1012 = vmatpush1.msra.mxu0 %v1011
  %1013 = vmatprep.subr.mxu0 0.0
  %v1014 = vand.u32 %v523, 4294901760
  %v1015 = vsub.f32 %v523, %v1014
  %v1016 = vand.u32 %v1015, 4294901760
  %1017 = vmatpush1.msra.mxu0 %v1016
  %1018 = vmatprep.subr.mxu0 0.0
  %v1019 = vand.u32 %v522, 4294901760
  %v1020 = vsub.f32 %v522, %v1019
  %v1021 = vand.u32 %v1020, 4294901760
  %1022 = vmatpush1.msra.mxu0 %v1021
  %1023 = vmatprep.subr.mxu0 0.0
  %v1024 = vand.u32 %v521, 4294901760
  %v1025 = vsub.f32 %v521, %v1024
  %v1026 = vand.u32 %v1025, 4294901760
  %1027 = vmatpush1.msra.mxu0 %v1026
  %1028 = vmatprep.subr.mxu0 0.0
  %v1029 = vand.u32 %v520, 4294901760
  %v1030 = vsub.f32 %v520, %v1029
  %v1031 = vand.u32 %v1030, 4294901760
  %1032 = vmatpush1.msra.mxu0 %v1031
  %1033 = vmatprep.subr.mxu0 0.0
  %v1034 = vand.u32 %v519, 4294901760
  %v1035 = vsub.f32 %v519, %v1034
  %v1036 = vand.u32 %v1035, 4294901760
  %1037 = vmatpush1.msra.mxu0 %v1036
  %1038 = vmatprep.subr.mxu0 0.0
  %v1039 = vand.u32 %v518, 4294901760
  %v1040 = vsub.f32 %v518, %v1039
  %v1041 = vand.u32 %v1040, 4294901760
  %1042 = vmatpush1.msra.mxu0 %v1041
  %1043 = vmatprep.subr.mxu0 0.0
  %v1044 = vand.u32 %v517, 4294901760
  %v1045 = vsub.f32 %v517, %v1044
  %v1046 = vand.u32 %v1045, 4294901760
  %1047 = vmatpush1.msra.mxu0 %v1046
  %1048 = vmatprep.subr.mxu0 0.0
  %1049 = vmatpush2.msra.mxu0 0.0
  %1050 = vmatprep.subr.mxu0 0.0
  %1051 = vmatpush2.msra.mxu0 0.0
  %1052 = vmatprep.subr.mxu0 0.0
  %1053 = vmatpush2.msra.mxu0 0.0
  %1054 = vmatprep.subr.mxu0 0.0
  %1055 = vmatpush2.msra.mxu0 0.0
  %1056 = vmatprep.subr.mxu0 0.0
  %1057 = vmatpush2.msra.mxu0 0.0
  %1058 = vmatprep.subr.mxu0 0.0
  %1059 = vmatpush2.msra.mxu0 0.0
  %1060 = vmatprep.subr.mxu0 0.0
  %1061 = vmatpush2.msra.mxu0 0.0
  %1062 = vmatprep.subr.mxu0 0.0
  %1063 = vmatpush2.msra.mxu0 0.0
  %1064 = vmatprep.subr.mxu0 0.0
  %1065 = vmatpush2.msra.mxu0 0.0
  %1066 = vmatprep.subr.mxu0 0.0
  %1067 = vmatpush2.msra.mxu0 0.0
  %1068 = vmatprep.subr.mxu0 0.0
  %1069 = vmatpush2.msra.mxu0 0.0
  %1070 = vmatprep.subr.mxu0 0.0
  %1071 = vmatpush2.msra.mxu0 0.0
  %1072 = vmatprep.subr.mxu0 0.0
  %1073 = vmatpush2.msra.mxu0 0.0
  %1074 = vmatprep.subr.mxu0 0.0
  %1075 = vmatpush2.msra.mxu0 0.0
  %1076 = vmatprep.subr.mxu0 0.0
  %1077 = vmatpush2.msra.mxu0 0.0
  %1078 = vmatprep.subr.mxu0 0.0
  %1079 = vmatpush2.msra.mxu0 0.0
  %1080 = vmatprep.mubr.f32.mxu0 0.0
  %v1081 = vand.u32 %v515, 4294901760
  %1082 = vmatmul.mubr.f32.gmra.mxu0 %v1081
  %v1083 = vpop.f32.mrf.mxu0
  %v1084 = vadd.f32 %v965, %v1083
  %v1085 = vpop.f32.mrf.mxu0
  %1086 = vdwg.mxu0
  %1087 = vmatprep.subr.mxu0 0.0
  %v1088 = vand.u32 %v532, 4294901760
  %1089 = vmatpush1.msra.mxu0 %v1088
  %1090 = vmatprep.subr.mxu0 0.0
  %v1091 = vand.u32 %v531, 4294901760
  %1092 = vmatpush1.msra.mxu0 %v1091
  %1093 = vmatprep.subr.mxu0 0.0
  %v1094 = vand.u32 %v530, 4294901760
  %1095 = vmatpush1.msra.mxu0 %v1094
  %1096 = vmatprep.subr.mxu0 0.0
  %v1097 = vand.u32 %v529, 4294901760
  %1098 = vmatpush1.msra.mxu0 %v1097
  %1099 = vmatprep.subr.mxu0 0.0
  %v1100 = vand.u32 %v528, 4294901760
  %1101 = vmatpush1.msra.mxu0 %v1100
  %1102 = vmatprep.subr.mxu0 0.0
  %v1103 = vand.u32 %v527, 4294901760
  %1104 = vmatpush1.msra.mxu0 %v1103
  %1105 = vmatprep.subr.mxu0 0.0
  %v1106 = vand.u32 %v526, 4294901760
  %1107 = vmatpush1.msra.mxu0 %v1106
  %1108 = vmatprep.subr.mxu0 0.0
  %v1109 = vand.u32 %v525, 4294901760
  %1110 = vmatpush1.msra.mxu0 %v1109
  %1111 = vmatprep.subr.mxu0 0.0
  %v1112 = vand.u32 %v524, 4294901760
  %1113 = vmatpush1.msra.mxu0 %v1112
  %1114 = vmatprep.subr.mxu0 0.0
  %v1115 = vand.u32 %v523, 4294901760
  %1116 = vmatpush1.msra.mxu0 %v1115
  %1117 = vmatprep.subr.mxu0 0.0
  %v1118 = vand.u32 %v522, 4294901760
  %1119 = vmatpush1.msra.mxu0 %v1118
  %1120 = vmatprep.subr.mxu0 0.0
  %v1121 = vand.u32 %v521, 4294901760
  %1122 = vmatpush1.msra.mxu0 %v1121
  %1123 = vmatprep.subr.mxu0 0.0
  %v1124 = vand.u32 %v520, 4294901760
  %1125 = vmatpush1.msra.mxu0 %v1124
  %1126 = vmatprep.subr.mxu0 0.0
  %v1127 = vand.u32 %v519, 4294901760
  %1128 = vmatpush1.msra.mxu0 %v1127
  %1129 = vmatprep.subr.mxu0 0.0
  %v1130 = vand.u32 %v518, 4294901760
  %1131 = vmatpush1.msra.mxu0 %v1130
  %1132 = vmatprep.subr.mxu0 0.0
  %v1133 = vand.u32 %v517, 4294901760
  %1134 = vmatpush1.msra.mxu0 %v1133
  %1135 = vmatprep.subr.mxu0 0.0
  %1136 = vmatpush2.msra.mxu0 0.0
  %1137 = vmatprep.subr.mxu0 0.0
  %1138 = vmatpush2.msra.mxu0 0.0
  %1139 = vmatprep.subr.mxu0 0.0
  %1140 = vmatpush2.msra.mxu0 0.0
  %1141 = vmatprep.subr.mxu0 0.0
  %1142 = vmatpush2.msra.mxu0 0.0
  %1143 = vmatprep.subr.mxu0 0.0
  %1144 = vmatpush2.msra.mxu0 0.0
  %1145 = vmatprep.subr.mxu0 0.0
  %1146 = vmatpush2.msra.mxu0 0.0
  %1147 = vmatprep.subr.mxu0 0.0
  %1148 = vmatpush2.msra.mxu0 0.0
  %1149 = vmatprep.subr.mxu0 0.0
  %1150 = vmatpush2.msra.mxu0 0.0
  %1151 = vmatprep.subr.mxu0 0.0
  %1152 = vmatpush2.msra.mxu0 0.0
  %1153 = vmatprep.subr.mxu0 0.0
  %1154 = vmatpush2.msra.mxu0 0.0
  %1155 = vmatprep.subr.mxu0 0.0
  %1156 = vmatpush2.msra.mxu0 0.0
  %1157 = vmatprep.subr.mxu0 0.0
  %1158 = vmatpush2.msra.mxu0 0.0
  %1159 = vmatprep.subr.mxu0 0.0
  %1160 = vmatpush2.msra.mxu0 0.0
  %1161 = vmatprep.subr.mxu0 0.0
  %1162 = vmatpush2.msra.mxu0 0.0
  %1163 = vmatprep.subr.mxu0 0.0
  %1164 = vmatpush2.msra.mxu0 0.0
  %1165 = vmatprep.subr.mxu0 0.0
  %1166 = vmatpush2.msra.mxu0 0.0
  %1167 = vmatprep.mubr.f32.mxu0 0.0
  %v1168 = vand.u32 %v515, 4294901760
  %1169 = vmatmul.mubr.f32.gmra.mxu0 %v1168
  %v1170 = vpop.f32.mrf.mxu0
  %v1171 = vadd.f32 %v1084, %v1170
  %v1172 = vpop.f32.mrf.mxu0
  %1173 = vdwg.mxu0
  %v1174 = vadd.f32 %v516, %v1171
  %vm1175 = vcmask 7168
  %1176 = vst.msk [vmem:[%s6] sm:$0xff] %vm1175, %v1174
  // Predicated region
  $region30: #{tpu_custom_call.1} parent=0 // pred_check
    %p1177 = pneg %p24
  $region31: #{tpu_custom_call.1} parent=0 // pred_check_branch
    %1179 = sbr.rel (%p1177) target = $region33
  $region32: #{tpu_custom_call.1} parent=0 // pred_region
    %v1180 = vld [vmem:[%s6] sm:$0xff]
    %s1181 = sld [smem:[#allocation2]]
    %v1182 = vstv %s1181
    %v1183 = vadd.f32 %v1180, %v1182
    %v1184 = vmul.f32 %v1183, 1.442695
    %v1185 = vpow.pop %v1184
    %1186 = vst.msk [vmem:[%s6] sm:$0xff] %vm1175, %v1185
  $region33: #{tpu_custom_call.1} parent=0 // pred_fallthru
    _
  // Predicated region
  $region34: #{tpu_custom_call.1} parent=0 // pred_check
    _
  $region35: #{tpu_custom_call.1} parent=0 // pred_check_branch
    %1188 = sbr.rel (0) target = $region37
  $region36: #{tpu_custom_call.1} parent=0 // pred_region
    _
  $region37: #{tpu_custom_call.1} parent=0 // pred_fallthru
    _
  // Predicated region
  $region38: #{tpu_custom_call.1} parent=0 // pred_check
    _
  $region39: #{tpu_custom_call.1} parent=0 // pred_check_branch
    %1190 = sbr.rel (0) target = $region41
  $region40: #{tpu_custom_call.1} parent=0 // pred_region
    _
  $region41: #{tpu_custom_call.1} parent=0 // pred_fallthru
    _

</llo_original>
